<compile_context>
chip_gen: v7x
topology: tpu7x:2x2x1
jax: 0.10.0
libtpu: 0.0.40
codegen_flags: <defaults>
</compile_context>

<pallas_src>
import jax
import jax.numpy as jnp
from jax import lax
from jax.experimental import pallas as pl
from jax.experimental.pallas import tpu as pltpu


def _round_up(n, m):
    return (n + m - 1) // m * m


# y[b, o] = sum_k x[b, k] * w[o, k]  (contract dim 1 of both operands).
_CONTRACT_LAST = (((1,), (1,)), ((), ()))


def _linear_kernel(x_ref, w_ref, o_ref):
    # Small path: whole padded arrays in VMEM, one MXU matmul, f32 accumulate.
    o_ref[...] = lax.dot_general(
        x_ref[...],
        w_ref[...],
        dimension_numbers=_CONTRACT_LAST,
        preferred_element_type=jnp.float32,
    ).astype(o_ref.dtype)


def _tiled_linear_kernel(x_ref, w_ref, o_ref, acc_ref):
    # Tiled path: reduction (k) is the LAST grid axis; output block stays
    # resident while we accumulate into an f32 VMEM scratch.
    @pl.when(pl.program_id(2) == 0)
    def _():
        acc_ref[...] = jnp.zeros_like(acc_ref)

    acc_ref[...] += lax.dot_general(
        x_ref[...],
        w_ref[...],
        dimension_numbers=_CONTRACT_LAST,
        preferred_element_type=jnp.float32,
    )

    @pl.when(pl.program_id(2) == pl.num_programs(2) - 1)
    def _():
        o_ref[...] = acc_ref[...].astype(o_ref.dtype)


# If the padded x, w, y together fit comfortably under a few MiB of VMEM,
# a single gridless call is cheapest (no per-step pipeline overhead).
_SINGLE_BLOCK_BYTES = 4 * 1024 * 1024


def logistic_regression_forward(x, w):
    """y = x @ w.T.  x: (B, input_dim); w: (output_dim, input_dim), PyTorch layout."""
    B, K = x.shape
    N, Kw = w.shape
    assert K == Kw, (K, Kw)

    # Lane-dense padding: zero padding on the contraction axis is exact for a
    # matmul; padded batch rows / output columns are sliced off at the end.
    Bp = _round_up(B, 8)
    Kp = _round_up(K, 128)
    Np = _round_up(N, 128)

    xp = jnp.pad(x, ((0, Bp - B), (0, Kp - K))) if (Bp, Kp) != (B, K) else x
    wp = jnp.pad(w, ((0, Np - N), (0, Kp - K))) if (Np, Kp) != (N, K) else w

    itemsize = jnp.dtype(x.dtype).itemsize
    total_bytes = (Bp * Kp + Np * Kp + Bp * Np) * itemsize

    if total_bytes <= _SINGLE_BLOCK_BYTES:
        # Tiny problem: gridless call, whole arrays in VMEM, one MXU matmul.
        yp = pl.pallas_call(
            _linear_kernel,
            out_shape=jax.ShapeDtypeStruct((Bp, Np), x.dtype),
        )(xp, wp)
    else:
        # Scaled-up problem: tiled grid with an f32 accumulator.
        # tn is a multiple of 128 for lane-dense stores; modest tiles keep
        # double-buffered inputs well under the v7x 32 MiB scoped VMEM too.
        # (On v5e, tn=128 matches the 4x128^2 MXU; 256 also divides cleanly.)
        tm = 256 if Bp > 256 else Bp
        tn = 256 if Np > 256 else Np
        tk = 512 if Kp > 512 else Kp
        Bp2, Np2, Kp2 = _round_up(Bp, tm), _round_up(Np, tn), _round_up(Kp, tk)
        if (Bp2, Kp2) != (Bp, Kp):
            xp = jnp.pad(xp, ((0, Bp2 - Bp), (0, Kp2 - Kp)))
        if (Np2, Kp2) != (Np, Kp):
            wp = jnp.pad(wp, ((0, Np2 - Np), (0, Kp2 - Kp)))

        # TODO(synk): for v6e, optionally cast x/w to bf16 (f32 accumulate) for
        # ~2x MXU throughput if the model tolerates it; kept f32 to match the
        # PyTorch module exactly.
        yp = pl.pallas_call(
            _tiled_linear_kernel,
            out_shape=jax.ShapeDtypeStruct((Bp2, Np2), x.dtype),
            grid_spec=pltpu.PrefetchScalarGridSpec(
                num_scalar_prefetch=0,
                grid=(Bp2 // tm, Np2 // tn, Kp2 // tk),
                in_specs=[
                    pl.BlockSpec((tm, tk), lambda i, j, k: (i, k)),
                    pl.BlockSpec((tn, tk), lambda i, j, k: (j, k)),
                ],
                out_specs=pl.BlockSpec((tm, tn), lambda i, j, k: (i, j)),
                scratch_shapes=[pltpu.VMEM((tm, tn), jnp.float32)],
            ),
            compiler_params=pltpu.CompilerParams(
                dimension_semantics=("parallel", "parallel", "arbitrary"),
            ),
        )(xp, wp)

    return yp[:B, :N]


if __name__ == "__main__":
    key = jax.random.PRNGKey(0)
    k1, k2, k3, k4 = jax.random.split(key, 4)

    # Small shapes consistent with the module (single Linear, no bias).
    batch, input_dim, output_dim = 8, 32, 16
    x_s = jax.random.normal(k1, (batch, input_dim), dtype=jnp.float32)
    w_s = jax.random.normal(k2, (output_dim, input_dim), dtype=jnp.float32) * 0.1

    y_s = jax.block_until_ready(logistic_regression_forward(x_s, w_s))
    assert y_s.shape == (batch, output_dim)
    assert jnp.allclose(y_s, x_s @ w_s.T, atol=1e-5, rtol=1e-5)

    # Larger shapes to exercise the tiled / accumulator path.
    x_l = jax.random.normal(k3, (1024, 1024), dtype=jnp.float32)
    w_l = jax.random.normal(k4, (512, 1024), dtype=jnp.float32) * 0.05

    y_l = jax.block_until_ready(logistic_regression_forward(x_l, w_l))
    y_ref_l = jnp.dot(x_l, w_l.T, precision="highest")
    assert y_l.shape == (1024, 512)
    assert jnp.allclose(y_l, y_ref_l, atol=1e-3, rtol=1e-3)

    print("KERNEL_OK")
</pallas_src>

<mosaic_0001>
module attributes {stable_mosaic.version = 11 : i64} {
  func.func @_linear_kernel(%arg0: memref<8x128xf32, #tpu.memory_space<vmem>>, %arg1: memref<128x128xf32, #tpu.memory_space<vmem>>, %arg2: memref<8x128xf32, #tpu.memory_space<vmem>>) attributes {dimension_semantics = [], scalar_prefetch = 0 : i64, scratch_operands = 0 : i64, tpu.core_type = #tpu.core_type<tc>} {
    %c0 = arith.constant 0 : index
    %c0_0 = arith.constant 0 : index
    %0 = vector.load %arg0[%c0, %c0_0] : memref<8x128xf32, #tpu.memory_space<vmem>>, vector<8x128xf32>
    %c0_1 = arith.constant 0 : index
    %c0_2 = arith.constant 0 : index
    %1 = vector.load %arg1[%c0_1, %c0_2] : memref<128x128xf32, #tpu.memory_space<vmem>>, vector<128x128xf32>
    %cst = arith.constant dense<0.000000e+00> : vector<8x128xf32>
    %2 = tpu.matmul %0, %1, %cst {dimension_numbers = #tpu.dot_dimension_numbers<[1], [1], [0], [0], [0, 0, 1, 0], [], []>} : vector<8x128xf32>, vector<128x128xf32>, vector<8x128xf32> -> vector<8x128xf32>
    %c0_3 = arith.constant 0 : index
    %c0_4 = arith.constant 0 : index
    %3 = vector.load %arg2[%c0_3, %c0_4] : memref<8x128xf32, #tpu.memory_space<vmem>>, vector<8x128xf32>
    tpu.vector_store %arg2[%c0_3, %c0_4], %2 {strides = array<i32>} : memref<8x128xf32, #tpu.memory_space<vmem>>, vector<8x128xf32>,
    return
  }
}

</mosaic_0001>

<llo_original>
// kernel: tpu_custom_call.1
$region0: #{tpu_custom_call.1}
  #allocation0 [shape = 'u32[]', space=smem, size = 0x4, offset = 0x4, fixed_abs, tag = 'smem constant byte address 0x4 - core index']
  #allocation1 [shape = 'u32[144,128]{1,0:T(1,128)}', space=vmem, size = 0x12000, scoped, tag = 'internal scratch']
  %s0 = inlined_call_operand.hbm [shape: f32[8,128], index: 0, kind: input, shape index: {}]
  %s1 = inlined_call_operand.hbm [shape: f32[128,128], index: 1, kind: input, shape index: {}]
  %s2 = inlined_call_operand.hbm [shape: f32[8,128], index: 2, kind: output, shape index: {}]
  %s3 = sld [smem:[#allocation0]]
  $region26: #{tpu_custom_call.1} parent=0
    _
  %s5 = ssub.s32 1, %s3
  %s6 = scalar_select 0, %s5, %s3
  $region1: #{tpu_custom_call.1} parent=0
    #allocation2 [shape = 'u8[4096]{0}', space=vmem, size = 0x1000, scoped, tag = 'input window, operand 0, single buffered']
    #allocation3 [shape = 's32[1]{0}', space=sflag, size = 0x4, scoped, tag = 'scoped memory for tpu_custom_call.1']
    #allocation4 [shape = 's32[1]{0}', space=sflag, size = 0x4, scoped, tag = 'scoped memory for tpu_custom_call.1']
    #allocation5 [shape = 'u8[65536]{0}', space=vmem, size = 0x10000, scoped, tag = 'input window, operand 1, single buffered']
    #allocation6 [shape = 's32[1]{0}', space=sflag, size = 0x4, scoped, tag = 'scoped memory for tpu_custom_call.1']
    #allocation7 [shape = 'u8[4096]{0}', space=vmem, size = 0x1000, scoped, tag = 'output window, operand 0, single buffered']
    %7 = vsyncpa [#allocation3], 0
    %8 = vsyncpa [#allocation6], 0
    %9 = vsyncpa [#allocation4], 0
    // Predicated region
    $region2: #{tpu_custom_call.1} parent=1 // pred_check
      _
    $region3: #{tpu_custom_call.1} parent=1 // pred_check_branch
      %11 = sbr.rel (0) target = $region5
    $region4: #{tpu_custom_call.1} parent=1 // pred_region
      %s13 = ssub.s32 128, 128
      %14 = vsyncadd [#allocation3], %s13
      %s16 = sshll.u32 [#allocation2], 4
      %s17 = int_to_ptr.vmem [resolvable:$true] %s16
      %19 = dma.hbm_to_vmem [thread:$0]  %s0, 128, %s17, [#allocation3]
    $region5: #{tpu_custom_call.1} parent=1 // pred_fallthru
      _
    // Predicated region
    $region6: #{tpu_custom_call.1} parent=1 // pred_check
      _
    $region7: #{tpu_custom_call.1} parent=1 // pred_check_branch
      %21 = sbr.rel (0) target = $region9
    $region8: #{tpu_custom_call.1} parent=1 // pred_region
      %s23 = ssub.s32 2048, 2048
      %24 = vsyncadd [#allocation6], %s23
      %s25 = sshll.u32 [#allocation5], 4
      %s26 = int_to_ptr.vmem [resolvable:$true] %s25
      %31 = dma.hbm_to_vmem [thread:$0]  %s1, 2048, %s26, [#allocation6], 128, 128, 8
    $region9: #{tpu_custom_call.1} parent=1 // pred_fallthru
      _
    // Predicated region
    $region10: #{tpu_custom_call.1} parent=1 // pred_check
      _
    $region11: #{tpu_custom_call.1} parent=1 // pred_check_branch
      %33 = sbr.rel (0) target = $region13
    $region12: #{tpu_custom_call.1} parent=1 // pred_region
      %34 = dma.done [#allocation3], 128
    $region13: #{tpu_custom_call.1} parent=1 // pred_fallthru
      _
    // Predicated region
    $region14: #{tpu_custom_call.1} parent=1 // pred_check
      _
    $region15: #{tpu_custom_call.1} parent=1 // pred_check_branch
      %36 = sbr.rel (0) target = $region17
    $region16: #{tpu_custom_call.1} parent=1 // pred_region
      %37 = dma.done [#allocation6], 2048
    $region17: #{tpu_custom_call.1} parent=1 // pred_fallthru
      _
    %v38 = vld [vmem:[#allocation2] sm:$0xff]
    %v39 = vld [vmem:[#allocation5] sm:$0xff]
    %v40 = vld [vmem:[#allocation5 + $0x8] sm:$0xff]
    %v41 = vld [vmem:[#allocation5 + $0x10] sm:$0xff]
    %v42 = vld [vmem:[#allocation5 + $0x18] sm:$0xff]
    %v43 = vld [vmem:[#allocation5 + $0x20] sm:$0xff]
    %v44 = vld [vmem:[#allocation5 + $0x28] sm:$0xff]
    %v45 = vld [vmem:[#allocation5 + $0x30] sm:$0xff]
    %v46 = vld [vmem:[#allocation5 + $0x38] sm:$0xff]
    %v47 = vld [vmem:[#allocation5 + $0x40] sm:$0xff]
    %v48 = vld [vmem:[#allocation5 + $0x48] sm:$0xff]
    %v49 = vld [vmem:[#allocation5 + $0x50] sm:$0xff]
    %v50 = vld [vmem:[#allocation5 + $0x58] sm:$0xff]
    %v51 = vld [vmem:[#allocation5 + $0x60] sm:$0xff]
    %v52 = vld [vmem:[#allocation5 + $0x68] sm:$0xff]
    %v53 = vld [vmem:[#allocation5 + $0x70] sm:$0xff]
    %v54 = vld [vmem:[#allocation5 + $0x78] sm:$0xff]
    %55 = vmatprep.subr.mxu0 0.0
    %56 = vmatpush1.xpose.msra.mxu0 %v39
    %57 = vmatprep.subr.mxu0 0.0
    %58 = vmatpush1.xpose.msra.mxu0 %v40
    %59 = vmatprep.subr.mxu0 0.0
    %60 = vmatpush1.xpose.msra.mxu0 %v41
    %61 = vmatprep.subr.mxu0 0.0
    %62 = vmatpush1.xpose.msra.mxu0 %v42
    %63 = vmatprep.subr.mxu0 0.0
    %64 = vmatpush1.xpose.msra.mxu0 %v43
    %65 = vmatprep.subr.mxu0 0.0
    %66 = vmatpush1.xpose.msra.mxu0 %v44
    %67 = vmatprep.subr.mxu0 0.0
    %68 = vmatpush1.xpose.msra.mxu0 %v45
    %69 = vmatprep.subr.mxu0 0.0
    %70 = vmatpush1.xpose.msra.mxu0 %v46
    %71 = vmatprep.subr.mxu0 0.0
    %72 = vmatpush1.xpose.msra.mxu0 %v47
    %73 = vmatprep.subr.mxu0 0.0
    %74 = vmatpush1.xpose.msra.mxu0 %v48
    %75 = vmatprep.subr.mxu0 0.0
    %76 = vmatpush1.xpose.msra.mxu0 %v49
    %77 = vmatprep.subr.mxu0 0.0
    %78 = vmatpush1.xpose.msra.mxu0 %v50
    %79 = vmatprep.subr.mxu0 0.0
    %80 = vmatpush1.xpose.msra.mxu0 %v51
    %81 = vmatprep.subr.mxu0 0.0
    %82 = vmatpush1.xpose.msra.mxu0 %v52
    %83 = vmatprep.subr.mxu0 0.0
    %84 = vmatpush1.xpose.msra.mxu0 %v53
    %85 = vmatprep.subr.mxu0 0.0
    %86 = vmatpush1.xpose.msra.mxu0 %v54
    %87 = vmatprep.subr.mxu0 0.0
    %88 = vmatpush1.xpose.msra.mxu0 0.0
    %89 = vmatprep.subr.mxu0 0.0
    %90 = vmatpush1.xpose.msra.mxu0 0.0
    %91 = vmatprep.subr.mxu0 0.0
    %92 = vmatpush1.xpose.msra.mxu0 0.0
    %93 = vmatprep.subr.mxu0 0.0
    %94 = vmatpush1.xpose.msra.mxu0 0.0
    %95 = vmatprep.subr.mxu0 0.0
    %96 = vmatpush1.xpose.msra.mxu0 0.0
    %97 = vmatprep.subr.mxu0 0.0
    %98 = vmatpush1.xpose.msra.mxu0 0.0
    %99 = vmatprep.subr.mxu0 0.0
    %100 = vmatpush1.xpose.msra.mxu0 0.0
    %101 = vmatprep.subr.mxu0 0.0
    %102 = vmatpush1.xpose.msra.mxu0 0.0
    %103 = vmatprep.subr.mxu0 0.0
    %104 = vmatpush1.xpose.msra.mxu0 0.0
    %105 = vmatprep.subr.mxu0 0.0
    %106 = vmatpush1.xpose.msra.mxu0 0.0
    %107 = vmatprep.subr.mxu0 0.0
    %108 = vmatpush1.xpose.msra.mxu0 0.0
    %109 = vmatprep.subr.mxu0 0.0
    %110 = vmatpush1.xpose.msra.mxu0 0.0
    %111 = vmatprep.subr.mxu0 0.0
    %112 = vmatpush1.xpose.msra.mxu0 0.0
    %113 = vmatprep.subr.mxu0 0.0
    %114 = vmatpush1.xpose.msra.mxu0 0.0
    %115 = vmatprep.subr.mxu0 0.0
    %116 = vmatpush1.xpose.msra.mxu0 0.0
    %117 = vmatprep.subr.mxu0 0.0
    %118 = vmatpush1.xpose.msra.mxu0 0.0
    %119 = vmatprep.mubr.f32.mxu0 0.0
    %120 = vmatmul.mubr.f32.gmra.mrb[0].mxu0 %v38
    %v121 = vpop.f32.mrb[0].mxu0
    %v122 = vadd.f32 0.0, %v121
    %v123 = vpop.f32.mrb[0].mxu0
    %124 = vdwg.mxu0
    %125 = vst [vmem:[#allocation7] sm:$0xff] %v122
    // Predicated region
    $region18: #{tpu_custom_call.1} parent=1 // pred_check
      _
    $region19: #{tpu_custom_call.1} parent=1 // pred_check_branch
      %127 = sbr.rel (0) target = $region21
    $region20: #{tpu_custom_call.1} parent=1 // pred_region
      %s129 = ssub.s32 128, 128
      %130 = vsyncadd [#allocation4], %s129
      %s132 = sshll.u32 [#allocation7], 4
      %s133 = int_to_ptr.vmem [resolvable:$true] %s132
      %135 = dma.vmem_to_hbm [thread:$0]  %s133, 128, %s2, [#allocation4]
    $region21: #{tpu_custom_call.1} parent=1 // pred_fallthru
      _
    // Predicated region
    $region22: #{tpu_custom_call.1} parent=1 // pred_check
      _
    $region23: #{tpu_custom_call.1} parent=1 // pred_check_branch
      %137 = sbr.rel (0) target = $region25
    $region24: #{tpu_custom_call.1} parent=1 // pred_region
      %138 = dma.done [#allocation4], 128
    $region25: #{tpu_custom_call.1} parent=1 // pred_fallthru
      _
    %139 = vsyncpa [#allocation3], 1
    %140 = vsyncpa [#allocation6], 1
    %141 = vsyncpa [#allocation4], 1

</llo_original>
